<compile_context>
chip_gen: v7x
topology: tpu7x:2x2x1
jax: 0.10.0
libtpu: 0.0.40
codegen_flags: <defaults>
</compile_context>

<pallas_src>
import math
import jax
import jax.numpy as jnp
from jax import lax
from jax.experimental import pallas as pl
from jax.experimental.pallas import tpu as pltpu


def _gelu_exact(x):
    # torch.nn.GELU() default: exact erf-based GELU
    return 0.5 * x * (1.0 + lax.erf(x * (1.0 / math.sqrt(2.0))))


def mlp_kernel(x_ref, w1_ref, b1_ref, w2_ref, b2_ref, w3_ref, b3_ref,
               w4_ref, b4_ref, o_ref):
    # One batch tile per grid step; activations are [features, tile_n] so the
    # batch sits on the lane axis (lane-dense vregs + lane-dense output store).
    x = x_ref[...]                                                  # [in, tile_n]

    h = jnp.dot(w1_ref[...], x, preferred_element_type=jnp.float32) + b1_ref[...]
    h = _gelu_exact(h)
    h = jnp.dot(w2_ref[...], h, preferred_element_type=jnp.float32) + b2_ref[...]
    h = _gelu_exact(h)
    h = jnp.dot(w3_ref[...], h, preferred_element_type=jnp.float32) + b3_ref[...]
    h = _gelu_exact(h)
    y = jnp.dot(w4_ref[...], h, preferred_element_type=jnp.float32) + b4_ref[...]

    o_ref[...] = y.astype(o_ref.dtype)                              # [out, tile_n]


def simple_linear_forward(x, params, *, tile_n=512):
    """x: [N, 3] float32. params: dict of [in,out] weights / [1,out] biases.

    Returns [N, outdim] (same semantics as the torch module).
    tile_n is the batch tile on the lane axis; keep it a multiple of 256
    (512-2048 for large N).  N need not divide tile_n (zero-padded internally).
    """
    N, in_dim = x.shape
    w1, b1 = params["w1"], params["b1"]
    w2, b2 = params["w2"], params["b2"]
    w3, b3 = params["w3"], params["b3"]
    w4, b4 = params["w4"], params["b4"]
    hid = w1.shape[1]
    outdim = w4.shape[1]

    # --- transpose the problem: batch -> lane axis -------------------------
    n_tiles = pl.cdiv(N, tile_n)
    n_pad = n_tiles * tile_n
    xT = x.T                                                   # [in_dim, N]
    if n_pad != N:
        xT = jnp.pad(xT, ((0, 0), (0, n_pad - N)))             # ragged tail

    # Weights as [out, in], biases as [out, 1] so the kernel does W @ h + b.
    w1T, w2T, w3T, w4T = w1.T, w2.T, w3.T, w4.T
    b1T, b2T, b3T, b4T = b1.T, b2.T, b3.T, b4.T

    def full(shape):
        # whole-array block (weights/biases resident across the grid)
        return pl.BlockSpec(shape, lambda i: tuple(0 for _ in shape))

    # Advisory cost estimate so XLA schedules surrounding ops sensibly.
    flops = 2 * n_pad * (in_dim * hid + 2 * hid * hid + hid * outdim)
    transcendentals = 3 * n_pad * hid                          # one erf per GELU elem
    bytes_accessed = 4 * (xT.size + n_pad * outdim
                          + w1.size + w2.size + w3.size + w4.size
                          + b1.size + b2.size + b3.size + b4.size)

    yT = pl.pallas_call(
        mlp_kernel,
        out_shape=jax.ShapeDtypeStruct((outdim, n_pad), x.dtype),
        grid_spec=pltpu.PrefetchScalarGridSpec(
            num_scalar_prefetch=0,
            grid=(n_tiles,),
            in_specs=[
                pl.BlockSpec((in_dim, tile_n), lambda i: (0, i)),  # x batch tile
                full((hid, in_dim)), full((hid, 1)),               # layer 1
                full((hid, hid)),    full((hid, 1)),               # layer 2
                full((hid, hid)),    full((hid, 1)),               # layer 3
                full((outdim, hid)), full((outdim, 1)),            # layer 4
            ],
            # Lane-dense output slab: [outdim, tile_n] with tile_n % 128 == 0.
            out_specs=pl.BlockSpec((outdim, tile_n), lambda i: (0, i)),
        ),
        compiler_params=pltpu.CompilerParams(
            dimension_semantics=("parallel",)),                    # megacore split
        cost_estimate=pl.CostEstimate(
            flops=flops,
            transcendentals=transcendentals,
            bytes_accessed=bytes_accessed),
    )(xT, w1T, b1T, w2T, b2T, w3T, b3T, w4T, b4T)

    return yT[:, :N].T                                             # [N, outdim]


def init_params(key, outdim=1, dtype=jnp.float32):
    """Deterministic init mimicking torch.nn.Linear (uniform +/- 1/sqrt(fan_in))."""
    dims = [(3, 64), (64, 64), (64, 64), (64, outdim)]
    params = {}
    keys = jax.random.split(key, 2 * len(dims))
    for idx, (fan_in, fan_out) in enumerate(dims):
        bound = 1.0 / math.sqrt(fan_in)
        w = jax.random.uniform(keys[2 * idx], (fan_in, fan_out),
                               minval=-bound, maxval=bound, dtype=dtype)
        b = jax.random.uniform(keys[2 * idx + 1], (1, fan_out),
                               minval=-bound, maxval=bound, dtype=dtype)
        params[f"w{idx + 1}"] = w
        params[f"b{idx + 1}"] = b
    return params


def reference_forward(x, params):
    h = x
    for i in range(1, 4):
        h = _gelu_exact(h @ params[f"w{i}"] + params[f"b{i}"])
    return h @ params["w4"] + params["b4"]


if __name__ == "__main__":
    key = jax.random.PRNGKey(0)
    pkey, xkey = jax.random.split(key)

    params = init_params(pkey, outdim=1)
    N = 500  # non-multiple of the tile to exercise the ragged-tail path
    x = jax.random.normal(xkey, (N, 3), dtype=jnp.float32)

    # tile_n=256 -> 2 grid steps (both TensorCores get work on v7x); for large
    # N sweep tile_n in the 512-2048 range.
    y = simple_linear_forward(x, params, tile_n=256)
    y = jax.block_until_ready(y)

    y_ref = reference_forward(x, params)
    assert y.shape == (N, 1)
    assert jnp.allclose(y, y_ref, atol=1e-4, rtol=1e-4), "mismatch vs JAX reference"

    print("KERNEL_OK")
</pallas_src>

<mosaic_0001>
module attributes {stable_mosaic.version = 11 : i64} {
  func.func @mlp_kernel(%arg0: i32, %arg1: memref<3x256xf32, #tpu.memory_space<vmem>>, %arg2: memref<64x3xf32, #tpu.memory_space<vmem>>, %arg3: memref<64x1xf32, #tpu.memory_space<vmem>>, %arg4: memref<64x64xf32, #tpu.memory_space<vmem>>, %arg5: memref<64x1xf32, #tpu.memory_space<vmem>>, %arg6: memref<64x64xf32, #tpu.memory_space<vmem>>, %arg7: memref<64x1xf32, #tpu.memory_space<vmem>>, %arg8: memref<1x64xf32, #tpu.memory_space<vmem>>, %arg9: memref<1x1xf32, #tpu.memory_space<vmem>>, %arg10: memref<1x256xf32, #tpu.memory_space<vmem>>) attributes {dimension_semantics = [#tpu.dimension_semantics<parallel>], iteration_bounds = array<i64: 2>, scalar_prefetch = 0 : i64, scratch_operands = 0 : i64, tpu.core_type = #tpu.core_type<tc>, window_params = [{transform_indices = @transform_0, window_bounds = array<i64: 3, 256>}, {pipeline_mode = #tpu.pipeline_mode<synchronous>, transform_indices = @transform_1, window_bounds = array<i64: 64, 3>}, {pipeline_mode = #tpu.pipeline_mode<synchronous>, transform_indices = @transform_2, window_bounds = array<i64: 64, 1>}, {pipeline_mode = #tpu.pipeline_mode<synchronous>, transform_indices = @transform_3, window_bounds = array<i64: 64, 64>}, {pipeline_mode = #tpu.pipeline_mode<synchronous>, transform_indices = @transform_4, window_bounds = array<i64: 64, 1>}, {pipeline_mode = #tpu.pipeline_mode<synchronous>, transform_indices = @transform_5, window_bounds = array<i64: 64, 64>}, {pipeline_mode = #tpu.pipeline_mode<synchronous>, transform_indices = @transform_6, window_bounds = array<i64: 64, 1>}, {pipeline_mode = #tpu.pipeline_mode<synchronous>, transform_indices = @transform_7, window_bounds = array<i64: 1, 64>}, {pipeline_mode = #tpu.pipeline_mode<synchronous>, transform_indices = @transform_8, window_bounds = array<i64: 1, 1>}, {transform_indices = @transform_9, window_bounds = array<i64: 1, 256>}]} {
    %c0 = arith.constant 0 : index
    %c0_0 = arith.constant 0 : index
    %0 = vector.load %arg1[%c0, %c0_0] : memref<3x256xf32, #tpu.memory_space<vmem>>, vector<3x256xf32>
    %c0_1 = arith.constant 0 : index
    %c0_2 = arith.constant 0 : index
    %1 = vector.load %arg2[%c0_1, %c0_2] : memref<64x3xf32, #tpu.memory_space<vmem>>, vector<64x3xf32>
    %cst = arith.constant dense<0.000000e+00> : vector<64x256xf32>
    %2 = tpu.matmul %1, %0, %cst {dimension_numbers = #tpu.dot_dimension_numbers<[1], [0], [0], [1], [0, 0, 1, 1], [], []>} : vector<64x3xf32>, vector<3x256xf32>, vector<64x256xf32> -> vector<64x256xf32>
    %c0_3 = arith.constant 0 : index
    %c0_4 = arith.constant 0 : index
    %3 = vector.load %arg3[%c0_3, %c0_4] : memref<64x1xf32, #tpu.memory_space<vmem>>, vector<64x1xf32>
    %4 = vector.broadcast %3 : vector<64x1xf32> to vector<64x256xf32>
    %5 = arith.addf %2, %4 : vector<64x256xf32>
    %cst_5 = arith.constant 5.000000e-01 : f32
    %6 = vector.broadcast %cst_5 : f32 to vector<64x256xf32>
    %7 = arith.mulf %6, %5 : vector<64x256xf32>
    %cst_6 = arith.constant 0.707106769 : f32
    %8 = vector.broadcast %cst_6 : f32 to vector<64x256xf32>
    %9 = arith.mulf %5, %8 : vector<64x256xf32>
    %10 = math.erf %9 : vector<64x256xf32>
    %cst_7 = arith.constant 1.000000e+00 : f32
    %11 = vector.broadcast %cst_7 : f32 to vector<64x256xf32>
    %12 = arith.addf %11, %10 : vector<64x256xf32>
    %13 = arith.mulf %7, %12 : vector<64x256xf32>
    %c0_8 = arith.constant 0 : index
    %c0_9 = arith.constant 0 : index
    %14 = vector.load %arg4[%c0_8, %c0_9] : memref<64x64xf32, #tpu.memory_space<vmem>>, vector<64x64xf32>
    %cst_10 = arith.constant dense<0.000000e+00> : vector<64x256xf32>
    %15 = tpu.matmul %14, %13, %cst_10 {dimension_numbers = #tpu.dot_dimension_numbers<[1], [0], [0], [1], [0, 0, 1, 1], [], []>} : vector<64x64xf32>, vector<64x256xf32>, vector<64x256xf32> -> vector<64x256xf32>
    %c0_11 = arith.constant 0 : index
    %c0_12 = arith.constant 0 : index
    %16 = vector.load %arg5[%c0_11, %c0_12] : memref<64x1xf32, #tpu.memory_space<vmem>>, vector<64x1xf32>
    %17 = vector.broadcast %16 : vector<64x1xf32> to vector<64x256xf32>
    %18 = arith.addf %15, %17 : vector<64x256xf32>
    %cst_13 = arith.constant 5.000000e-01 : f32
    %19 = vector.broadcast %cst_13 : f32 to vector<64x256xf32>
    %20 = arith.mulf %19, %18 : vector<64x256xf32>
    %cst_14 = arith.constant 0.707106769 : f32
    %21 = vector.broadcast %cst_14 : f32 to vector<64x256xf32>
    %22 = arith.mulf %18, %21 : vector<64x256xf32>
    %23 = math.erf %22 : vector<64x256xf32>
    %cst_15 = arith.constant 1.000000e+00 : f32
    %24 = vector.broadcast %cst_15 : f32 to vector<64x256xf32>
    %25 = arith.addf %24, %23 : vector<64x256xf32>
    %26 = arith.mulf %20, %25 : vector<64x256xf32>
    %c0_16 = arith.constant 0 : index
    %c0_17 = arith.constant 0 : index
    %27 = vector.load %arg6[%c0_16, %c0_17] : memref<64x64xf32, #tpu.memory_space<vmem>>, vector<64x64xf32>
    %cst_18 = arith.constant dense<0.000000e+00> : vector<64x256xf32>
    %28 = tpu.matmul %27, %26, %cst_18 {dimension_numbers = #tpu.dot_dimension_numbers<[1], [0], [0], [1], [0, 0, 1, 1], [], []>} : vector<64x64xf32>, vector<64x256xf32>, vector<64x256xf32> -> vector<64x256xf32>
    %c0_19 = arith.constant 0 : index
    %c0_20 = arith.constant 0 : index
    %29 = vector.load %arg7[%c0_19, %c0_20] : memref<64x1xf32, #tpu.memory_space<vmem>>, vector<64x1xf32>
    %30 = vector.broadcast %29 : vector<64x1xf32> to vector<64x256xf32>
    %31 = arith.addf %28, %30 : vector<64x256xf32>
    %cst_21 = arith.constant 5.000000e-01 : f32
    %32 = vector.broadcast %cst_21 : f32 to vector<64x256xf32>
    %33 = arith.mulf %32, %31 : vector<64x256xf32>
    %cst_22 = arith.constant 0.707106769 : f32
    %34 = vector.broadcast %cst_22 : f32 to vector<64x256xf32>
    %35 = arith.mulf %31, %34 : vector<64x256xf32>
    %36 = math.erf %35 : vector<64x256xf32>
    %cst_23 = arith.constant 1.000000e+00 : f32
    %37 = vector.broadcast %cst_23 : f32 to vector<64x256xf32>
    %38 = arith.addf %37, %36 : vector<64x256xf32>
    %39 = arith.mulf %33, %38 : vector<64x256xf32>
    %c0_24 = arith.constant 0 : index
    %c0_25 = arith.constant 0 : index
    %40 = vector.load %arg8[%c0_24, %c0_25] : memref<1x64xf32, #tpu.memory_space<vmem>>, vector<1x64xf32>
    %cst_26 = arith.constant dense<0.000000e+00> : vector<1x256xf32>
    %41 = tpu.matmul %40, %39, %cst_26 {dimension_numbers = #tpu.dot_dimension_numbers<[1], [0], [0], [1], [0, 0, 1, 1], [], []>} : vector<1x64xf32>, vector<64x256xf32>, vector<1x256xf32> -> vector<1x256xf32>
    %c0_27 = arith.constant 0 : index
    %c0_28 = arith.constant 0 : index
    %42 = vector.load %arg9[%c0_27, %c0_28] : memref<1x1xf32, #tpu.memory_space<vmem>>, vector<1x1xf32>
    %43 = vector.broadcast %42 : vector<1x1xf32> to vector<1x256xf32>
    %44 = arith.addf %41, %43 : vector<1x256xf32>
    %c0_29 = arith.constant 0 : index
    %c0_30 = arith.constant 0 : index
    %45 = vector.load %arg10[%c0_29, %c0_30] : memref<1x256xf32, #tpu.memory_space<vmem>>, vector<1x256xf32>
    tpu.vector_store %arg10[%c0_29, %c0_30], %44 {strides = array<i32>} : memref<1x256xf32, #tpu.memory_space<vmem>>, vector<1x256xf32>,
    return
  }
  func.func @transform_0(%arg0: i32) -> (i32, i32) {
    %c0_i32 = arith.constant 0 : i32
    %c0_i32_0 = arith.constant 0 : i32
    return %c0_i32, %arg0 : i32, i32
  }
  func.func @transform_1(%arg0: i32) -> (i32, i32) {
    %c0_i32 = arith.constant 0 : i32
    %c0_i32_0 = arith.constant 0 : i32
    %c0_i32_1 = arith.constant 0 : i32
    return %c0_i32, %c0_i32_0 : i32, i32
  }
  func.func @transform_2(%arg0: i32) -> (i32, i32) {
    %c0_i32 = arith.constant 0 : i32
    %c0_i32_0 = arith.constant 0 : i32
    %c0_i32_1 = arith.constant 0 : i32
    return %c0_i32, %c0_i32_0 : i32, i32
  }
  func.func @transform_3(%arg0: i32) -> (i32, i32) {
    %c0_i32 = arith.constant 0 : i32
    %c0_i32_0 = arith.constant 0 : i32
    %c0_i32_1 = arith.constant 0 : i32
    return %c0_i32, %c0_i32_0 : i32, i32
  }
  func.func @transform_4(%arg0: i32) -> (i32, i32) {
    %c0_i32 = arith.constant 0 : i32
    %c0_i32_0 = arith.constant 0 : i32
    %c0_i32_1 = arith.constant 0 : i32
    return %c0_i32, %c0_i32_0 : i32, i32
  }
  func.func @transform_5(%arg0: i32) -> (i32, i32) {
    %c0_i32 = arith.constant 0 : i32
    %c0_i32_0 = arith.constant 0 : i32
    %c0_i32_1 = arith.constant 0 : i32
    return %c0_i32, %c0_i32_0 : i32, i32
  }
  func.func @transform_6(%arg0: i32) -> (i32, i32) {
    %c0_i32 = arith.constant 0 : i32
    %c0_i32_0 = arith.constant 0 : i32
    %c0_i32_1 = arith.constant 0 : i32
    return %c0_i32, %c0_i32_0 : i32, i32
  }
  func.func @transform_7(%arg0: i32) -> (i32, i32) {
    %c0_i32 = arith.constant 0 : i32
    %c0_i32_0 = arith.constant 0 : i32
    %c0_i32_1 = arith.constant 0 : i32
    return %c0_i32, %c0_i32_0 : i32, i32
  }
  func.func @transform_8(%arg0: i32) -> (i32, i32) {
    %c0_i32 = arith.constant 0 : i32
    %c0_i32_0 = arith.constant 0 : i32
    %c0_i32_1 = arith.constant 0 : i32
    return %c0_i32, %c0_i32_0 : i32, i32
  }
  func.func @transform_9(%arg0: i32) -> (i32, i32) {
    %c0_i32 = arith.constant 0 : i32
    %c0_i32_0 = arith.constant 0 : i32
    return %c0_i32, %arg0 : i32, i32
  }
}

</mosaic_0001>

<llo_original>
// kernel: tpu_custom_call.1
$region0: #{tpu_custom_call.1}
  #allocation0 [shape = 'u32[]', space=smem, size = 0x4, offset = 0x4, fixed_abs, tag = 'smem constant byte address 0x4 - core index']
  #allocation1 [shape = 'u32[144,128]{1,0:T(1,128)}', space=vmem, size = 0x12000, scoped, tag = 'internal scratch']
  #allocation2 [shape = 'f32[1,1]{1,0:T(1,128)S(1)}', space=vmem, size = 0x200, scoped, tag = 'scoped memory for tpu_custom_call.1']
  %s0 = inlined_call_operand.vmem [shape: f32[3,512], index: 0, kind: input, shape index: {}]
  %s1 = inlined_call_operand.vmem [shape: f32[64,3], index: 1, kind: input, shape index: {}]
  %s2 = inlined_call_operand.vmem [shape: f32[64,1], index: 2, kind: input, shape index: {}]
  %s3 = inlined_call_operand.vmem [shape: f32[64,64], index: 3, kind: input, shape index: {}]
  %s4 = inlined_call_operand.vmem [shape: f32[64,1], index: 4, kind: input, shape index: {}]
  %s5 = inlined_call_operand.vmem [shape: f32[64,64], index: 5, kind: input, shape index: {}]
  %s6 = inlined_call_operand.vmem [shape: f32[64,1], index: 6, kind: input, shape index: {}]
  %s7 = inlined_call_operand.vmem [shape: f32[1,64], index: 7, kind: input, shape index: {}]
  %s8 = inlined_call_operand.<no memory space> [shape: f32[1,1], index: 8, kind: input, shape index: {}]
  %s9 = inlined_call_operand.hbm [shape: f32[1,512], index: 9, kind: output, shape index: {}]
  %s10 = sld [smem:[#allocation0]]
  $region69: #{tpu_custom_call.1} parent=0
    _
  %s12 = ssub.s32 1, %s10
  %s13 = scalar_select 0, %s12, %s10
  %v14 = vstv %s8
  %15 = vst [vmem:[#allocation2] sm:$0x1] %v14
  $region1: #{tpu_custom_call.1} parent=0
    #allocation3 [shape = 'u8[2048]{0}', space=vmem, size = 0x800, scoped, tag = 'output window, operand 0']
    #allocation4 [shape = 's32[2]{0}', space=sflag, size = 0x8, scoped, tag = 'scoped memory for tpu_custom_call.1']
    %16 = vsyncpa [#allocation4], 0
    %s17 = scalar_lea.sflag [#allocation4], 1
    %18 = vsyncpa %s17, 0
    loop: start=0, step=1, limit=4
    $region2: #{tpu_custom_call.1} parent=1 // loop_pre_header
      _
    $region3: #{tpu_custom_call.1} parent=1 // loop_header
      %s20 = sphi 0, %s24
      %p21 = scmp.ge.s32.totalorder %s20, 4
      %s30 = sphi 0, %s32
      %s33 = sphi 0, %s30
      %s34 = sphi 0, %s33
      %s50 = sphi 0, %s34
      %s54 = sphi 0, %s54
      %s56 = sphi 0, %s54
      %s57 = sphi 0, %s56
      %s71 = sphi 0, %s57
      %s75 = sphi 0, %s75
      %s77 = sphi 0, %s75
      %s78 = sphi 0, %s77
      %s92 = sphi 0, %s78
      %s96 = sphi 0, %s96
      %s98 = sphi 0, %s96
      %s99 = sphi 0, %s98
      %s113 = sphi 0, %s99
      %s117 = sphi 0, %s117
      %s119 = sphi 0, %s117
      %s120 = sphi 0, %s119
      %s134 = sphi 0, %s120
      %s138 = sphi 0, %s138
      %s140 = sphi 0, %s138
      %s141 = sphi 0, %s140
      %s155 = sphi 0, %s141
      %s159 = sphi 0, %s159
      %s161 = sphi 0, %s159
      %s162 = sphi 0, %s161
      %s176 = sphi 0, %s162
      %s180 = sphi 0, %s180
      %s182 = sphi 0, %s180
      %s183 = sphi 0, %s182
      %s197 = sphi 0, %s183
      %s201 = sphi 0, %s201
      %s203 = sphi 0, %s201
      %s204 = sphi 0, %s203
      %s218 = sphi 0, %s204
      %s224 = sphi 0, %s226
      %s227 = sphi 0, %s224
      %s228 = sphi 0, %s227
      %s244 = sphi 0, %s228
    $region4: #{tpu_custom_call.1} parent=1 // loop_header_branch
      %23 = sbr.rel (%p21) target = $region8
    $region5: #{tpu_custom_call.1} parent=1 // loop_body
      %s25 = ssub.s32 %s20, 1
      %s26 = ssub.s32 %s20, 2
      %s27 = sadd.s32 %s20, 1
      %s28 = ssub.s32 %s20, %s27
      %p29 = scmp.eq.s32.totalorder %s28, 0
      %s31 = sadd.s32 %s30, 1
      %s32 = scalar_select %p29, %s30, %s31
      %p35 = pneg %p29
      %p36 = scmp.eq.s32.totalorder %s20, 1
      %p37 = por %p35, %p36
      %p38 = scmp.ne.s32.totalorder %s30, %s33
      %p39 = scmp.eq.s32.totalorder %s20, 0
      %p40 = por %p38, %p39
      %p41 = scmp.ne.s32.totalorder %s30, %s33
      %p42 = scmp.eq.s32.totalorder %s25, 1
      %p43 = por %p41, %p42
      %p44 = scmp.ne.s32.totalorder %s33, %s34
      %p45 = scmp.eq.s32.totalorder %s25, 0
      %p46 = por %p44, %p45
      %p47 = scmp.ne.s32.totalorder %s33, %s34
      %p48 = scmp.eq.s32.totalorder %s26, 1
      %p49 = por %p47, %p48
      %p51 = scmp.ne.s32.totalorder %s34, %s50
      %p52 = scmp.eq.s32.totalorder %s26, 0
      %p53 = por %p51, %p52
      %s55 = sadd.s32 %s54, 1
      %p58 = scmp.eq.s32.totalorder %s20, 1
      %p59 = scmp.ne.s32.totalorder %s54, %s56
      %p60 = scmp.eq.s32.totalorder %s20, 0
      %p61 = por %p59, %p60
      %p62 = scmp.ne.s32.totalorder %s54, %s56
      %p63 = scmp.eq.s32.totalorder %s25, 1
      %p64 = por %p62, %p63
      %p65 = scmp.ne.s32.totalorder %s56, %s57
      %p66 = scmp.eq.s32.totalorder %s25, 0
      %p67 = por %p65, %p66
      %p68 = scmp.ne.s32.totalorder %s56, %s57
      %p69 = scmp.eq.s32.totalorder %s26, 1
      %p70 = por %p68, %p69
      %p72 = scmp.ne.s32.totalorder %s57, %s71
      %p73 = scmp.eq.s32.totalorder %s26, 0
      %p74 = por %p72, %p73
      %s76 = sadd.s32 %s75, 1
      %p79 = scmp.eq.s32.totalorder %s20, 1
      %p80 = scmp.ne.s32.totalorder %s75, %s77
      %p81 = scmp.eq.s32.totalorder %s20, 0
      %p82 = por %p80, %p81
      %p83 = scmp.ne.s32.totalorder %s75, %s77
      %p84 = scmp.eq.s32.totalorder %s25, 1
      %p85 = por %p83, %p84
      %p86 = scmp.ne.s32.totalorder %s77, %s78
      %p87 = scmp.eq.s32.totalorder %s25, 0
      %p88 = por %p86, %p87
      %p89 = scmp.ne.s32.totalorder %s77, %s78
      %p90 = scmp.eq.s32.totalorder %s26, 1
      %p91 = por %p89, %p90
      %p93 = scmp.ne.s32.totalorder %s78, %s92
      %p94 = scmp.eq.s32.totalorder %s26, 0
      %p95 = por %p93, %p94
      %s97 = sadd.s32 %s96, 1
      %p100 = scmp.eq.s32.totalorder %s20, 1
      %p101 = scmp.ne.s32.totalorder %s96, %s98
      %p102 = scmp.eq.s32.totalorder %s20, 0
      %p103 = por %p101, %p102
      %p104 = scmp.ne.s32.totalorder %s96, %s98
      %p105 = scmp.eq.s32.totalorder %s25, 1
      %p106 = por %p104, %p105
      %p107 = scmp.ne.s32.totalorder %s98, %s99
      %p108 = scmp.eq.s32.totalorder %s25, 0
      %p109 = por %p107, %p108
      %p110 = scmp.ne.s32.totalorder %s98, %s99
      %p111 = scmp.eq.s32.totalorder %s26, 1
      %p112 = por %p110, %p111
      %p114 = scmp.ne.s32.totalorder %s99, %s113
      %p115 = scmp.eq.s32.totalorder %s26, 0
      %p116 = por %p114, %p115
      %s118 = sadd.s32 %s117, 1
      %p121 = scmp.eq.s32.totalorder %s20, 1
      %p122 = scmp.ne.s32.totalorder %s117, %s119
      %p123 = scmp.eq.s32.totalorder %s20, 0
      %p124 = por %p122, %p123
      %p125 = scmp.ne.s32.totalorder %s117, %s119
      %p126 = scmp.eq.s32.totalorder %s25, 1
      %p127 = por %p125, %p126
      %p128 = scmp.ne.s32.totalorder %s119, %s120
      %p129 = scmp.eq.s32.totalorder %s25, 0
      %p130 = por %p128, %p129
      %p131 = scmp.ne.s32.totalorder %s119, %s120
      %p132 = scmp.eq.s32.totalorder %s26, 1
      %p133 = por %p131, %p132
      %p135 = scmp.ne.s32.totalorder %s120, %s134
      %p136 = scmp.eq.s32.totalorder %s26, 0
      %p137 = por %p135, %p136
      %s139 = sadd.s32 %s138, 1
      %p142 = scmp.eq.s32.totalorder %s20, 1
      %p143 = scmp.ne.s32.totalorder %s138, %s140
      %p144 = scmp.eq.s32.totalorder %s20, 0
      %p145 = por %p143, %p144
      %p146 = scmp.ne.s32.totalorder %s138, %s140
      %p147 = scmp.eq.s32.totalorder %s25, 1
      %p148 = por %p146, %p147
      %p149 = scmp.ne.s32.totalorder %s140, %s141
      %p150 = scmp.eq.s32.totalorder %s25, 0
      %p151 = por %p149, %p150
      %p152 = scmp.ne.s32.totalorder %s140, %s141
      %p153 = scmp.eq.s32.totalorder %s26, 1
      %p154 = por %p152, %p153
      %p156 = scmp.ne.s32.totalorder %s141, %s155
      %p157 = scmp.eq.s32.totalorder %s26, 0
      %p158 = por %p156, %p157
      %s160 = sadd.s32 %s159, 1
      %p163 = scmp.eq.s32.totalorder %s20, 1
      %p164 = scmp.ne.s32.totalorder %s159, %s161
      %p165 = scmp.eq.s32.totalorder %s20, 0
      %p166 = por %p164, %p165
      %p167 = scmp.ne.s32.totalorder %s159, %s161
      %p168 = scmp.eq.s32.totalorder %s25, 1
      %p169 = por %p167, %p168
      %p170 = scmp.ne.s32.totalorder %s161, %s162
      %p171 = scmp.eq.s32.totalorder %s25, 0
      %p172 = por %p170, %p171
      %p173 = scmp.ne.s32.totalorder %s161, %s162
      %p174 = scmp.eq.s32.totalorder %s26, 1
      %p175 = por %p173, %p174
      %p177 = scmp.ne.s32.totalorder %s162, %s176
      %p178 = scmp.eq.s32.totalorder %s26, 0
      %p179 = por %p177, %p178
      %s181 = sadd.s32 %s180, 1
      %p184 = scmp.eq.s32.totalorder %s20, 1
      %p185 = scmp.ne.s32.totalorder %s180, %s182
      %p186 = scmp.eq.s32.totalorder %s20, 0
      %p187 = por %p185, %p186
      %p188 = scmp.ne.s32.totalorder %s180, %s182
      %p189 = scmp.eq.s32.totalorder %s25, 1
      %p190 = por %p188, %p189
      %p191 = scmp.ne.s32.totalorder %s182, %s183
      %p192 = scmp.eq.s32.totalorder %s25, 0
      %p193 = por %p191, %p192
      %p194 = scmp.ne.s32.totalorder %s182, %s183
      %p195 = scmp.eq.s32.totalorder %s26, 1
      %p196 = por %p194, %p195
      %p198 = scmp.ne.s32.totalorder %s183, %s197
      %p199 = scmp.eq.s32.totalorder %s26, 0
      %p200 = por %p198, %p199
      %s202 = sadd.s32 %s201, 1
      %p205 = scmp.eq.s32.totalorder %s20, 1
      %p206 = scmp.ne.s32.totalorder %s201, %s203
      %p207 = scmp.eq.s32.totalorder %s20, 0
      %p208 = por %p206, %p207
      %p209 = scmp.ne.s32.totalorder %s201, %s203
      %p210 = scmp.eq.s32.totalorder %s25, 1
      %p211 = por %p209, %p210
      %p212 = scmp.ne.s32.totalorder %s203, %s204
      %p213 = scmp.eq.s32.totalorder %s25, 0
      %p214 = por %p212, %p213
      %p215 = scmp.ne.s32.totalorder %s203, %s204
      %p216 = scmp.eq.s32.totalorder %s26, 1
      %p217 = por %p215, %p216
      %p219 = scmp.ne.s32.totalorder %s204, %s218
      %p220 = scmp.eq.s32.totalorder %s26, 0
      %p221 = por %p219, %p220
      %s222 = ssub.s32 %s20, %s27
      %p223 = scmp.eq.s32.totalorder %s222, 0
      %s225 = sadd.s32 %s224, 1
      %s226 = scalar_select %p223, %s224, %s225
      %p229 = pneg %p223
      %p230 = scmp.eq.s32.totalorder %s20, 1
      %p231 = por %p229, %p230
      %p232 = scmp.ne.s32.totalorder %s224, %s227
      %p233 = scmp.eq.s32.totalorder %s20, 0
      %p234 = por %p232, %p233
      %p235 = scmp.ne.s32.totalorder %s224, %s227
      %p236 = scmp.eq.s32.totalorder %s25, 1
      %p237 = por %p235, %p236
      %p238 = scmp.ne.s32.totalorder %s227, %s228
      %p239 = scmp.eq.s32.totalorder %s25, 0
      %p240 = por %p238, %p239
      %p241 = scmp.ne.s32.totalorder %s227, %s228
      %p242 = scmp.eq.s32.totalorder %s26, 1
      %p243 = por %p241, %p242
      %p245 = scmp.ne.s32.totalorder %s228, %s244
      %p246 = scmp.eq.s32.totalorder %s26, 0
      %p247 = por %p245, %p246
      %p248 = scmp.le.s32.totalorder 1, %s20
      %p249 = scmp.lt.s32.totalorder %s20, 3
      %p250 = pnand %p248, %p249
      %p251 = pneg %p250
      // Predicated region
      $region9: #{tpu_custom_call.1} parent=5 // pred_check
        _
      $region10: #{tpu_custom_call.1} parent=5 // pred_check_branch
        %253 = sbr.rel (%p250) target = $region12
      $region11: #{tpu_custom_call.1} parent=5 // pred_region
        %s254 = ssub.s32 %s20, 1
        // Predicated region
        $region13: #{tpu_custom_call.1} parent=11 // pred_check
          %p255 = pneg %p67
        $region14: #{tpu_custom_call.1} parent=11 // pred_check_branch
          %257 = sbr.rel (%p255) target = $region16
        $region15: #{tpu_custom_call.1} parent=11 // pred_region
          _
        $region16: #{tpu_custom_call.1} parent=11 // pred_fallthru
          _
        // Predicated region
        $region17: #{tpu_custom_call.1} parent=11 // pred_check
          %p258 = pneg %p88
        $region18: #{tpu_custom_call.1} parent=11 // pred_check_branch
          %260 = sbr.rel (%p258) target = $region20
        $region19: #{tpu_custom_call.1} parent=11 // pred_region
          _
        $region20: #{tpu_custom_call.1} parent=11 // pred_fallthru
          _
        // Predicated region
        $region21: #{tpu_custom_call.1} parent=11 // pred_check
          %p261 = pneg %p109
        $region22: #{tpu_custom_call.1} parent=11 // pred_check_branch
          %263 = sbr.rel (%p261) target = $region24
        $region23: #{tpu_custom_call.1} parent=11 // pred_region
          _
        $region24: #{tpu_custom_call.1} parent=11 // pred_fallthru
          _
        // Predicated region
        $region25: #{tpu_custom_call.1} parent=11 // pred_check
          %p264 = pneg %p130
        $region26: #{tpu_custom_call.1} parent=11 // pred_check_branch
          %266 = sbr.rel (%p264) target = $region28
        $region27: #{tpu_custom_call.1} parent=11 // pred_region
          _
        $region28: #{tpu_custom_call.1} parent=11 // pred_fallthru
          _
        // Predicated region
        $region29: #{tpu_custom_call.1} parent=11 // pred_check
          %p267 = pneg %p151
        $region30: #{tpu_custom_call.1} parent=11 // pred_check_branch
          %269 = sbr.rel (%p267) target = $region32
        $region31: #{tpu_custom_call.1} parent=11 // pred_region
          _
        $region32: #{tpu_custom_call.1} parent=11 // pred_fallthru
          _
        // Predicated region
        $region33: #{tpu_custom_call.1} parent=11 // pred_check
          %p270 = pneg %p172
        $region34: #{tpu_custom_call.1} parent=11 // pred_check_branch
          %272 = sbr.rel (%p270) target = $region36
        $region35: #{tpu_custom_call.1} parent=11 // pred_region
          _
        $region36: #{tpu_custom_call.1} parent=11 // pred_fallthru
          _
        // Predicated region
        $region37: #{tpu_custom_call.1} parent=11 // pred_check
          %p273 = pneg %p193
        $region38: #{tpu_custom_call.1} parent=11 // pred_check_branch
          %275 = sbr.rel (%p273) target = $region40
        $region39: #{tpu_custom_call.1} parent=11 // pred_region
          _
        $region40: #{tpu_custom_call.1} parent=11 // pred_fallthru
          _
        // Predicated region
        $region41: #{tpu_custom_call.1} parent=11 // pred_check
          %p276 = pneg %p214
        $region42: #{tpu_custom_call.1} parent=11 // pred_check_branch
          %278 = sbr.rel (%p276) target = $region44
        $region43: #{tpu_custom_call.1} parent=11 // pred_region
          _
        $region44: #{tpu_custom_call.1} parent=11 // pred_fallthru
          _
      $region12: #{tpu_custom_call.1} parent=5 // pred_fallthru
        _
      %p279 = scmp.lt.s32.totalorder %s20, 2
      // Predicated region
      $region45: #{tpu_custom_call.1} parent=5 // pred_check
        %p280 = pneg %p279
      $region46: #{tpu_custom_call.1} parent=5 // pred_check_branch
        %282 = sbr.rel (%p280) target = $region48
      $region47: #{tpu_custom_call.1} parent=5 // pred_region
        // Predicated region
        $region49: #{tpu_custom_call.1} parent=47 // pred_check
          %p283 = pneg %p40
        $region50: #{tpu_custom_call.1} parent=47 // pred_check_branch
          %285 = sbr.rel (%p283) target = $region52
        $region51: #{tpu_custom_call.1} parent=47 // pred_region
          %s286 = smul.u32 2, %s20
          %p287 = scmp.lt.s32.totalorder %s286, 3
          %s288 = scalar_select %p287, %s286, 3
          %s289 = smul.addr %s288, 4
          %s290 = scalar_lea.vmem %s0, %s289
          %s291 = smul.u32 2, %s20
        $region52: #{tpu_custom_call.1} parent=47 // pred_fallthru
          _
      $region48: #{tpu_custom_call.1} parent=5 // pred_fallthru
        _
      %p292 = scmp.le.s32.totalorder 1, %s20
      %p293 = scmp.lt.s32.totalorder %s20, 3
      %p294 = pnand %p292, %p293
      %p295 = pneg %p294
      // Predicated region
      $region53: #{tpu_custom_call.1} parent=5 // pred_check
        _
      $region54: #{tpu_custom_call.1} parent=5 // pred_check_branch
        %297 = sbr.rel (%p294) target = $region56
      $region55: #{tpu_custom_call.1} parent=5 // pred_region
        %s298 = ssub.s32 %s20, 1
        %s299 = smul.u32 2, %s25
        %p300 = scmp.lt.s32.totalorder %s299, 3
        %s301 = scalar_select %p300, %s299, 3
        %s302 = smul.addr %s301, 4
        %s303 = scalar_lea.vmem %s0, %s302
        %p304 = pneg %p46
        %p305 = pneg %p43
        %p306 = pneg %p67
        %p307 = pneg %p64
        %p308 = pneg %p88
        %p309 = pneg %p85
        %p310 = pneg %p109
        %p311 = pneg %p106
        %p312 = pneg %p130
        %p313 = pneg %p127
        %p314 = pneg %p151
        %p315 = pneg %p148
        %p316 = pneg %p172
        %p317 = pneg %p169
        %p318 = pneg %p193
        %p319 = pneg %p190
        %p320 = pneg %p214
        %p321 = pneg %p211
        %p322 = pneg %p240
        %p323 = pneg %p237
        %s324 = sand.u32 %s227, 1
        %s325 = scalar_lea.sflag [#allocation4], %s324
        %s326 = sand.u32 %s227, 1
        %s327 = smul.addr %s326, 2
        %s328 = scalar_lea.vmem [#allocation3], %s327
        %s329 = smul.u32 2, %s25
        %p330 = scmp.lt.s32.totalorder %s329, 3
        %s331 = scalar_select %p330, %s329, 3
        %s332 = smul.addr %s331, 4
        %s333 = scalar_lea.vmem %s0, %s332
        %s334 = smul.u32 2, %s25
        %s335 = smul.u32 2, %s25
        %v336 = vld [vmem:[%s333] sm:$0x77]
        %v337 = vld [vmem:[%s1] sm:$0xff]
        %v338 = vld [vmem:[%s1 + $0x8] sm:$0xff]
        %v339 = vld [vmem:[%s1 + $0x10] sm:$0xff]
        %v340 = vld [vmem:[%s1 + $0x18] sm:$0xff]
        %v341 = vld [vmem:[%s1 + $0x20] sm:$0xff]
        %v342 = vld [vmem:[%s1 + $0x28] sm:$0xff]
        %v343 = vld [vmem:[%s1 + $0x30] sm:$0xff]
        %v344 = vld [vmem:[%s1 + $0x38] sm:$0xff]
        %v345 = vld [vmem:[%s2] sm:$0xff]
        %v346 = vld [vmem:[%s2 + $0x8] sm:$0xff]
        %v347 = vld [vmem:[%s2 + $0x10] sm:$0xff]
        %v348 = vld [vmem:[%s2 + $0x18] sm:$0xff]
        %v349 = vld [vmem:[%s2 + $0x20] sm:$0xff]
        %v350 = vld [vmem:[%s2 + $0x28] sm:$0xff]
        %v351 = vld [vmem:[%s2 + $0x30] sm:$0xff]
        %v352 = vld [vmem:[%s2 + $0x38] sm:$0xff]
        %354 = vset.pattern.permute.xlu0 0
        %355 = vperm.xlu0 %354, %v345
        %v356 = vpop.permute.xlu0 %355
        %359 = vset.pattern.permute.xlu0 0
        %360 = vperm.xlu0 %359, %v346
        %v361 = vpop.permute.xlu0 %360
        %364 = vset.pattern.permute.xlu0 0
        %365 = vperm.xlu0 %364, %v347
        %v366 = vpop.permute.xlu0 %365
        %369 = vset.pattern.permute.xlu0 0
        %370 = vperm.xlu0 %369, %v348
        %v371 = vpop.permute.xlu0 %370
        %374 = vset.pattern.permute.xlu0 0
        %375 = vperm.xlu0 %374, %v349
        %v376 = vpop.permute.xlu0 %375
        %379 = vset.pattern.permute.xlu0 0
        %380 = vperm.xlu0 %379, %v350
        %v381 = vpop.permute.xlu0 %380
        %384 = vset.pattern.permute.xlu0 0
        %385 = vperm.xlu0 %384, %v351
        %v386 = vpop.permute.xlu0 %385
        %389 = vset.pattern.permute.xlu0 0
        %390 = vperm.xlu0 %389, %v352
        %v391 = vpop.permute.xlu0 %390
        %v394 = vcombine.high %v336, %v336
        %vm395 = vcmask 23552
        %v397 = vsel %vm395, %v337, 0
        %v400 = vsel %vm395, %v338, 0
        %v403 = vsel %vm395, %v339, 0
        %v406 = vsel %vm395, %v340, 0
        %v409 = vsel %vm395, %v341, 0
        %v412 = vsel %vm395, %v342, 0
        %v415 = vsel %vm395, %v343, 0
        %v418 = vsel %vm395, %v344, 0
        %vm420 = vcmask 1042432
        %v421 = vsel %vm420, %v336, 0
        %v423 = vsel %vm420, %v394, 0
        %425 = vmatprep.subr.mxu0 %v423
        %426 = vmatpush1.msra.mxu0 %v421
        %427 = vmatprep.subr.mxu0 0.0
        %428 = vmatpush1.msra.mxu0 0.0
        %429 = vmatprep.subr.mxu0 0.0
        %430 = vmatpush1.msra.mxu0 0.0
        %431 = vmatprep.subr.mxu0 0.0
        %432 = vmatpush1.msra.mxu0 0.0
        %433 = vmatprep.subr.mxu0 0.0
        %434 = vmatpush1.msra.mxu0 0.0
        %435 = vmatprep.subr.mxu0 0.0
        %436 = vmatpush1.msra.mxu0 0.0
        %437 = vmatprep.subr.mxu0 0.0
        %438 = vmatpush1.msra.mxu0 0.0
        %439 = vmatprep.subr.mxu0 0.0
        %440 = vmatpush1.msra.mxu0 0.0
        %441 = vmatprep.subr.mxu0 0.0
        %442 = vmatpush1.msra.mxu0 0.0
        %443 = vmatprep.subr.mxu0 0.0
        %444 = vmatpush1.msra.mxu0 0.0
        %445 = vmatprep.subr.mxu0 0.0
        %446 = vmatpush1.msra.mxu0 0.0
        %447 = vmatprep.subr.mxu0 0.0
        %448 = vmatpush1.msra.mxu0 0.0
        %449 = vmatprep.subr.mxu0 0.0
        %450 = vmatpush1.msra.mxu0 0.0
        %451 = vmatprep.subr.mxu0 0.0
        %452 = vmatpush1.msra.mxu0 0.0
        %453 = vmatprep.subr.mxu0 0.0
        %454 = vmatpush1.msra.mxu0 0.0
        %455 = vmatprep.subr.mxu0 0.0
        %456 = vmatpush1.msra.mxu0 0.0
        %457 = vmatprep.subr.mxu0 0.0
        %458 = vmatpush1.msra.mxu0 0.0
        %459 = vmatprep.subr.mxu0 0.0
        %460 = vmatpush1.msra.mxu0 0.0
        %461 = vmatprep.subr.mxu0 0.0
        %462 = vmatpush1.msra.mxu0 0.0
        %463 = vmatprep.subr.mxu0 0.0
        %464 = vmatpush1.msra.mxu0 0.0
        %465 = vmatprep.subr.mxu0 0.0
        %466 = vmatpush1.msra.mxu0 0.0
        %467 = vmatprep.subr.mxu0 0.0
        %468 = vmatpush1.msra.mxu0 0.0
        %469 = vmatprep.subr.mxu0 0.0
        %470 = vmatpush1.msra.mxu0 0.0
        %471 = vmatprep.subr.mxu0 0.0
        %472 = vmatpush1.msra.mxu0 0.0
        %473 = vmatprep.subr.mxu0 0.0
        %474 = vmatpush1.msra.mxu0 0.0
        %475 = vmatprep.subr.mxu0 0.0
        %476 = vmatpush1.msra.mxu0 0.0
        %477 = vmatprep.subr.mxu0 0.0
        %478 = vmatpush1.msra.mxu0 0.0
        %479 = vmatprep.subr.mxu0 0.0
        %480 = vmatpush1.msra.mxu0 0.0
        %481 = vmatprep.subr.mxu0 0.0
        %482 = vmatpush1.msra.mxu0 0.0
        %483 = vmatprep.subr.mxu0 0.0
        %484 = vmatpush1.msra.mxu0 0.0
        %485 = vmatprep.subr.mxu0 0.0
        %486 = vmatpush1.msra.mxu0 0.0
        %487 = vmatprep.subr.mxu0 0.0
        %488 = vmatpush1.msra.mxu0 0.0
        %489 = vmatprep.mubr.f32.mxu0 0.0
        %490 = vmatmul.mubr.f32.gmra.mrb[0].mxu0 %v397
        %v491 = vpop.f32.mrb[0].mxu0
        %v492 = vadd.f32 %v356, %v491
        %v493 = vpop.f32.mrb[0].mxu0
        %v494 = vadd.f32 %v356, %v493
        %495 = vmatprep.mubr.f32.mxu0 0.0
        %496 = vmatmul.mubr.f32.gmra.mrb[0].mxu0 %v400
        %v497 = vpop.f32.mrb[0].mxu0
        %v498 = vadd.f32 %v361, %v497
        %v499 = vpop.f32.mrb[0].mxu0
        %v500 = vadd.f32 %v361, %v499
        %501 = vmatprep.mubr.f32.mxu0 0.0
        %502 = vmatmul.mubr.f32.gmra.mrb[0].mxu0 %v403
        %v503 = vpop.f32.mrb[0].mxu0
        %v504 = vadd.f32 %v366, %v503
        %v505 = vpop.f32.mrb[0].mxu0
        %v506 = vadd.f32 %v366, %v505
        %507 = vmatprep.mubr.f32.mxu0 0.0
        %508 = vmatmul.mubr.f32.gmra.mrb[0].mxu0 %v406
        %v509 = vpop.f32.mrb[0].mxu0
        %v510 = vadd.f32 %v371, %v509
        %v511 = vpop.f32.mrb[0].mxu0
        %v512 = vadd.f32 %v371, %v511
        %513 = vmatprep.mubr.f32.mxu0 0.0
        %514 = vmatmul.mubr.f32.gmra.mrb[0].mxu0 %v409
        %v515 = vpop.f32.mrb[0].mxu0
        %v516 = vadd.f32 %v376, %v515
        %v517 = vpop.f32.mrb[0].mxu0
        %v518 = vadd.f32 %v376, %v517
        %519 = vmatprep.mubr.f32.mxu0 0.0
        %520 = vmatmul.mubr.f32.gmra.mrb[0].mxu0 %v412
        %v521 = vpop.f32.mrb[0].mxu0
        %v522 = vadd.f32 %v381, %v521
        %v523 = vpop.f32.mrb[0].mxu0
        %v524 = vadd.f32 %v381, %v523
        %525 = vmatprep.mubr.f32.mxu0 0.0
        %526 = vmatmul.mubr.f32.gmra.mrb[0].mxu0 %v415
        %v527 = vpop.f32.mrb[0].mxu0
        %v528 = vadd.f32 %v386, %v527
        %v529 = vpop.f32.mrb[0].mxu0
        %v530 = vadd.f32 %v386, %v529
        %531 = vmatprep.mubr.f32.mxu0 0.0
        %532 = vmatmul.mubr.f32.gmra.mrb[0].mxu0 %v418
        %v533 = vpop.f32.mrb[0].mxu0
        %v534 = vadd.f32 %v391, %v533
        %v535 = vpop.f32.mrb[0].mxu0
        %v536 = vadd.f32 %v391, %v535
        %537 = vdwg.mxu0
        %v538 = vmul.f32 %v492, 0.5
        %v539 = vmul.f32 %v494, 0.5
        %v540 = vmul.f32 %v498, 0.5
        %v541 = vmul.f32 %v500, 0.5
        %v542 = vmul.f32 %v504, 0.5
        %v543 = vmul.f32 %v506, 0.5
        %v544 = vmul.f32 %v510, 0.5
        %v545 = vmul.f32 %v512, 0.5
        %v546 = vmul.f32 %v516, 0.5
        %v547 = vmul.f32 %v518, 0.5
        %v548 = vmul.f32 %v522, 0.5
        %v549 = vmul.f32 %v524, 0.5
        %v550 = vmul.f32 %v528, 0.5
        %v551 = vmul.f32 %v530, 0.5
        %v552 = vmul.f32 %v534, 0.5
        %v553 = vmul.f32 %v536, 0.5
        %v554 = vmul.f32 %v492, 0.70710677
        %v555 = vmul.f32 %v494, 0.70710677
        %v556 = vmul.f32 %v498, 0.70710677
        %v557 = vmul.f32 %v500, 0.70710677
        %v558 = vmul.f32 %v504, 0.70710677
        %v559 = vmul.f32 %v506, 0.70710677
        %v560 = vmul.f32 %v510, 0.70710677
        %v561 = vmul.f32 %v512, 0.70710677
        %v562 = vmul.f32 %v516, 0.70710677
        %v563 = vmul.f32 %v518, 0.70710677
        %v564 = vmul.f32 %v522, 0.70710677
        %v565 = vmul.f32 %v524, 0.70710677
        %v566 = vmul.f32 %v528, 0.70710677
        %v567 = vmul.f32 %v530, 0.70710677
        %v568 = vmul.f32 %v534, 0.70710677
        %v569 = vmul.f32 %v536, 0.70710677
        %v570 = verf.f32.pop %v554
        %v571 = verf.f32.pop %v555
        %v572 = verf.f32.pop %v556
        %v573 = verf.f32.pop %v557
        %v574 = verf.f32.pop %v558
        %v575 = verf.f32.pop %v559
        %v576 = verf.f32.pop %v560
        %v577 = verf.f32.pop %v561
        %v578 = verf.f32.pop %v562
        %v579 = verf.f32.pop %v563
        %v580 = verf.f32.pop %v564
        %v581 = verf.f32.pop %v565
        %v582 = verf.f32.pop %v566
        %v583 = verf.f32.pop %v567
        %v584 = verf.f32.pop %v568
        %v585 = verf.f32.pop %v569
        %v586 = vadd.f32 %v570, 1.0
        %v587 = vadd.f32 %v571, 1.0
        %v588 = vadd.f32 %v572, 1.0
        %v589 = vadd.f32 %v573, 1.0
        %v590 = vadd.f32 %v574, 1.0
        %v591 = vadd.f32 %v575, 1.0
        %v592 = vadd.f32 %v576, 1.0
        %v593 = vadd.f32 %v577, 1.0
        %v594 = vadd.f32 %v578, 1.0
        %v595 = vadd.f32 %v579, 1.0
        %v596 = vadd.f32 %v580, 1.0
        %v597 = vadd.f32 %v581, 1.0
        %v598 = vadd.f32 %v582, 1.0
        %v599 = vadd.f32 %v583, 1.0
        %v600 = vadd.f32 %v584, 1.0
        %v601 = vadd.f32 %v585, 1.0
        %v602 = vmul.f32 %v538, %v586
        %v603 = vmul.f32 %v539, %v587
        %v604 = vmul.f32 %v540, %v588
        %v605 = vmul.f32 %v541, %v589
        %v606 = vmul.f32 %v542, %v590
        %v607 = vmul.f32 %v543, %v591
        %v608 = vmul.f32 %v544, %v592
        %v609 = vmul.f32 %v545, %v593
        %v610 = vmul.f32 %v546, %v594
        %v611 = vmul.f32 %v547, %v595
        %v612 = vmul.f32 %v548, %v596
        %v613 = vmul.f32 %v549, %v597
        %v614 = vmul.f32 %v550, %v598
        %v615 = vmul.f32 %v551, %v599
        %v616 = vmul.f32 %v552, %v600
        %v617 = vmul.f32 %v553, %v601
        %v618 = vld [vmem:[%s3] sm:$0xff]
        %v619 = vld [vmem:[%s3 + $0x8] sm:$0xff]
        %v620 = vld [vmem:[%s3 + $0x10] sm:$0xff]
        %v621 = vld [vmem:[%s3 + $0x18] sm:$0xff]
        %v622 = vld [vmem:[%s3 + $0x20] sm:$0xff]
        %v623 = vld [vmem:[%s3 + $0x28] sm:$0xff]
        %v624 = vld [vmem:[%s3 + $0x30] sm:$0xff]
        %v625 = vld [vmem:[%s3 + $0x38] sm:$0xff]
        %v626 = vld [vmem:[%s4] sm:$0xff]
        %v627 = vld [vmem:[%s4 + $0x8] sm:$0xff]
        %v628 = vld [vmem:[%s4 + $0x10] sm:$0xff]
        %v629 = vld [vmem:[%s4 + $0x18] sm:$0xff]
        %v630 = vld [vmem:[%s4 + $0x20] sm:$0xff]
        %v631 = vld [vmem:[%s4 + $0x28] sm:$0xff]
        %v632 = vld [vmem:[%s4 + $0x30] sm:$0xff]
        %v633 = vld [vmem:[%s4 + $0x38] sm:$0xff]
        %635 = vset.pattern.permute.xlu0 0
        %636 = vperm.xlu0 %635, %v626
        %v637 = vpop.permute.xlu0 %636
        %640 = vset.pattern.permute.xlu0 0
        %641 = vperm.xlu0 %640, %v627
        %v642 = vpop.permute.xlu0 %641
        %645 = vset.pattern.permute.xlu0 0
        %646 = vperm.xlu0 %645, %v628
        %v647 = vpop.permute.xlu0 %646
        %650 = vset.pattern.permute.xlu0 0
        %651 = vperm.xlu0 %650, %v629
        %v652 = vpop.permute.xlu0 %651
        %655 = vset.pattern.permute.xlu0 0
        %656 = vperm.xlu0 %655, %v630
        %v657 = vpop.permute.xlu0 %656
        %660 = vset.pattern.permute.xlu0 0
        %661 = vperm.xlu0 %660, %v631
        %v662 = vpop.permute.xlu0 %661
        %665 = vset.pattern.permute.xlu0 0
        %666 = vperm.xlu0 %665, %v632
        %v667 = vpop.permute.xlu0 %666
        %670 = vset.pattern.permute.xlu0 0
        %671 = vperm.xlu0 %670, %v633
        %v672 = vpop.permute.xlu0 %671
        %vm674 = vcmask 523264
        %v676 = vsel %vm674, %v618, 0
        %v679 = vsel %vm674, %v619, 0
        %v682 = vsel %vm674, %v620, 0
        %v685 = vsel %vm674, %v621, 0
        %v688 = vsel %vm674, %v622, 0
        %v691 = vsel %vm674, %v623, 0
        %v694 = vsel %vm674, %v624, 0
        %v697 = vsel %vm674, %v625, 0
        %699 = vmatprep.subr.mxu0 %v603
        %700 = vmatpush1.msra.mxu0 %v602
        %701 = vmatprep.subr.mxu0 %v605
        %702 = vmatpush1.msra.mxu0 %v604
        %703 = vmatprep.subr.mxu0 %v607
        %704 = vmatpush1.msra.mxu0 %v606
        %705 = vmatprep.subr.mxu0 %v609
        %706 = vmatpush1.msra.mxu0 %v608
        %707 = vmatprep.subr.mxu0 %v611
        %708 = vmatpush1.msra.mxu0 %v610
        %709 = vmatprep.subr.mxu0 %v613
        %710 = vmatpush1.msra.mxu0 %v612
        %711 = vmatprep.subr.mxu0 %v615
        %712 = vmatpush1.msra.mxu0 %v614
        %713 = vmatprep.subr.mxu0 %v617
        %714 = vmatpush1.msra.mxu0 %v616
        %715 = vmatprep.subr.mxu0 0.0
        %716 = vmatpush1.msra.mxu0 0.0
        %717 = vmatprep.subr.mxu0 0.0
        %718 = vmatpush1.msra.mxu0 0.0
        %719 = vmatprep.subr.mxu0 0.0
        %720 = vmatpush1.msra.mxu0 0.0
        %721 = vmatprep.subr.mxu0 0.0
        %722 = vmatpush1.msra.mxu0 0.0
        %723 = vmatprep.subr.mxu0 0.0
        %724 = vmatpush1.msra.mxu0 0.0
        %725 = vmatprep.subr.mxu0 0.0
        %726 = vmatpush1.msra.mxu0 0.0
        %727 = vmatprep.subr.mxu0 0.0
        %728 = vmatpush1.msra.mxu0 0.0
        %729 = vmatprep.subr.mxu0 0.0
        %730 = vmatpush1.msra.mxu0 0.0
        %731 = vmatprep.subr.mxu0 0.0
        %732 = vmatpush1.msra.mxu0 0.0
        %733 = vmatprep.subr.mxu0 0.0
        %734 = vmatpush1.msra.mxu0 0.0
        %735 = vmatprep.subr.mxu0 0.0
        %736 = vmatpush1.msra.mxu0 0.0
        %737 = vmatprep.subr.mxu0 0.0
        %738 = vmatpush1.msra.mxu0 0.0
        %739 = vmatprep.subr.mxu0 0.0
        %740 = vmatpush1.msra.mxu0 0.0
        %741 = vmatprep.subr.mxu0 0.0
        %742 = vmatpush1.msra.mxu0 0.0
        %743 = vmatprep.subr.mxu0 0.0
        %744 = vmatpush1.msra.mxu0 0.0
        %745 = vmatprep.subr.mxu0 0.0
        %746 = vmatpush1.msra.mxu0 0.0
        %747 = vmatprep.subr.mxu0 0.0
        %748 = vmatpush1.msra.mxu0 0.0
        %749 = vmatprep.subr.mxu0 0.0
        %750 = vmatpush1.msra.mxu0 0.0
        %751 = vmatprep.subr.mxu0 0.0
        %752 = vmatpush1.msra.mxu0 0.0
        %753 = vmatprep.subr.mxu0 0.0
        %754 = vmatpush1.msra.mxu0 0.0
        %755 = vmatprep.subr.mxu0 0.0
        %756 = vmatpush1.msra.mxu0 0.0
        %757 = vmatprep.subr.mxu0 0.0
        %758 = vmatpush1.msra.mxu0 0.0
        %759 = vmatprep.subr.mxu0 0.0
        %760 = vmatpush1.msra.mxu0 0.0
        %761 = vmatprep.subr.mxu0 0.0
        %762 = vmatpush1.msra.mxu0 0.0
        %763 = vmatprep.mubr.f32.mxu0 0.0
        %764 = vmatmul.mubr.f32.gmra.mrb[0].mxu0 %v676
        %v765 = vpop.f32.mrb[0].mxu0
        %v766 = vadd.f32 %v637, %v765
        %v767 = vpop.f32.mrb[0].mxu0
        %v768 = vadd.f32 %v637, %v767
        %769 = vmatprep.mubr.f32.mxu0 0.0
        %770 = vmatmul.mubr.f32.gmra.mrb[0].mxu0 %v679
        %v771 = vpop.f32.mrb[0].mxu0
        %v772 = vadd.f32 %v642, %v771
        %v773 = vpop.f32.mrb[0].mxu0
        %v774 = vadd.f32 %v642, %v773
        %775 = vmatprep.mubr.f32.mxu0 0.0
        %776 = vmatmul.mubr.f32.gmra.mrb[0].mxu0 %v682
        %v777 = vpop.f32.mrb[0].mxu0
        %v778 = vadd.f32 %v647, %v777
        %v779 = vpop.f32.mrb[0].mxu0
        %v780 = vadd.f32 %v647, %v779
        %781 = vmatprep.mubr.f32.mxu0 0.0
        %782 = vmatmul.mubr.f32.gmra.mrb[0].mxu0 %v685
        %v783 = vpop.f32.mrb[0].mxu0
        %v784 = vadd.f32 %v652, %v783
        %v785 = vpop.f32.mrb[0].mxu0
        %v786 = vadd.f32 %v652, %v785
        %787 = vmatprep.mubr.f32.mxu0 0.0
        %788 = vmatmul.mubr.f32.gmra.mrb[0].mxu0 %v688
        %v789 = vpop.f32.mrb[0].mxu0
        %v790 = vadd.f32 %v657, %v789
        %v791 = vpop.f32.mrb[0].mxu0
        %v792 = vadd.f32 %v657, %v791
        %793 = vmatprep.mubr.f32.mxu0 0.0
        %794 = vmatmul.mubr.f32.gmra.mrb[0].mxu0 %v691
        %v795 = vpop.f32.mrb[0].mxu0
        %v796 = vadd.f32 %v662, %v795
        %v797 = vpop.f32.mrb[0].mxu0
        %v798 = vadd.f32 %v662, %v797
        %799 = vmatprep.mubr.f32.mxu0 0.0
        %800 = vmatmul.mubr.f32.gmra.mrb[0].mxu0 %v694
        %v801 = vpop.f32.mrb[0].mxu0
        %v802 = vadd.f32 %v667, %v801
        %v803 = vpop.f32.mrb[0].mxu0
        %v804 = vadd.f32 %v667, %v803
        %805 = vmatprep.mubr.f32.mxu0 0.0
        %806 = vmatmul.mubr.f32.gmra.mrb[0].mxu0 %v697
        %v807 = vpop.f32.mrb[0].mxu0
        %v808 = vadd.f32 %v672, %v807
        %v809 = vpop.f32.mrb[0].mxu0
        %v810 = vadd.f32 %v672, %v809
        %811 = vdwg.mxu0
        %v812 = vmul.f32 %v766, 0.5
        %v813 = vmul.f32 %v768, 0.5
        %v814 = vmul.f32 %v772, 0.5
        %v815 = vmul.f32 %v774, 0.5
        %v816 = vmul.f32 %v778, 0.5
        %v817 = vmul.f32 %v780, 0.5
        %v818 = vmul.f32 %v784, 0.5
        %v819 = vmul.f32 %v786, 0.5
        %v820 = vmul.f32 %v790, 0.5
        %v821 = vmul.f32 %v792, 0.5
        %v822 = vmul.f32 %v796, 0.5
        %v823 = vmul.f32 %v798, 0.5
        %v824 = vmul.f32 %v802, 0.5
        %v825 = vmul.f32 %v804, 0.5
        %v826 = vmul.f32 %v808, 0.5
        %v827 = vmul.f32 %v810, 0.5
        %v828 = vmul.f32 %v766, 0.70710677
        %v829 = vmul.f32 %v768, 0.70710677
        %v830 = vmul.f32 %v772, 0.70710677
        %v831 = vmul.f32 %v774, 0.70710677
        %v832 = vmul.f32 %v778, 0.70710677
        %v833 = vmul.f32 %v780, 0.70710677
        %v834 = vmul.f32 %v784, 0.70710677
        %v835 = vmul.f32 %v786, 0.70710677
        %v836 = vmul.f32 %v790, 0.70710677
        %v837 = vmul.f32 %v792, 0.70710677
        %v838 = vmul.f32 %v796, 0.70710677
        %v839 = vmul.f32 %v798, 0.70710677
        %v840 = vmul.f32 %v802, 0.70710677
        %v841 = vmul.f32 %v804, 0.70710677
        %v842 = vmul.f32 %v808, 0.70710677
        %v843 = vmul.f32 %v810, 0.70710677
        %v844 = verf.f32.pop %v828
        %v845 = verf.f32.pop %v829
        %v846 = verf.f32.pop %v830
        %v847 = verf.f32.pop %v831
        %v848 = verf.f32.pop %v832
        %v849 = verf.f32.pop %v833
        %v850 = verf.f32.pop %v834
        %v851 = verf.f32.pop %v835
        %v852 = verf.f32.pop %v836
        %v853 = verf.f32.pop %v837
        %v854 = verf.f32.pop %v838
        %v855 = verf.f32.pop %v839
        %v856 = verf.f32.pop %v840
        %v857 = verf.f32.pop %v841
        %v858 = verf.f32.pop %v842
        %v859 = verf.f32.pop %v843
        %v860 = vadd.f32 %v844, 1.0
        %v861 = vadd.f32 %v845, 1.0
        %v862 = vadd.f32 %v846, 1.0
        %v863 = vadd.f32 %v847, 1.0
        %v864 = vadd.f32 %v848, 1.0
        %v865 = vadd.f32 %v849, 1.0
        %v866 = vadd.f32 %v850, 1.0
        %v867 = vadd.f32 %v851, 1.0
        %v868 = vadd.f32 %v852, 1.0
        %v869 = vadd.f32 %v853, 1.0
        %v870 = vadd.f32 %v854, 1.0
        %v871 = vadd.f32 %v855, 1.0
        %v872 = vadd.f32 %v856, 1.0
        %v873 = vadd.f32 %v857, 1.0
        %v874 = vadd.f32 %v858, 1.0
        %v875 = vadd.f32 %v859, 1.0
        %v876 = vmul.f32 %v812, %v860
        %v877 = vmul.f32 %v813, %v861
        %v878 = vmul.f32 %v814, %v862
        %v879 = vmul.f32 %v815, %v863
        %v880 = vmul.f32 %v816, %v864
        %v881 = vmul.f32 %v817, %v865
        %v882 = vmul.f32 %v818, %v866
        %v883 = vmul.f32 %v819, %v867
        %v884 = vmul.f32 %v820, %v868
        %v885 = vmul.f32 %v821, %v869
        %v886 = vmul.f32 %v822, %v870
        %v887 = vmul.f32 %v823, %v871
        %v888 = vmul.f32 %v824, %v872
        %v889 = vmul.f32 %v825, %v873
        %v890 = vmul.f32 %v826, %v874
        %v891 = vmul.f32 %v827, %v875
        %v892 = vld [vmem:[%s5] sm:$0xff]
        %v893 = vld [vmem:[%s5 + $0x8] sm:$0xff]
        %v894 = vld [vmem:[%s5 + $0x10] sm:$0xff]
        %v895 = vld [vmem:[%s5 + $0x18] sm:$0xff]
        %v896 = vld [vmem:[%s5 + $0x20] sm:$0xff]
        %v897 = vld [vmem:[%s5 + $0x28] sm:$0xff]
        %v898 = vld [vmem:[%s5 + $0x30] sm:$0xff]
        %v899 = vld [vmem:[%s5 + $0x38] sm:$0xff]
        %v900 = vld [vmem:[%s6] sm:$0xff]
        %v901 = vld [vmem:[%s6 + $0x8] sm:$0xff]
        %v902 = vld [vmem:[%s6 + $0x10] sm:$0xff]
        %v903 = vld [vmem:[%s6 + $0x18] sm:$0xff]
        %v904 = vld [vmem:[%s6 + $0x20] sm:$0xff]
        %v905 = vld [vmem:[%s6 + $0x28] sm:$0xff]
        %v906 = vld [vmem:[%s6 + $0x30] sm:$0xff]
        %v907 = vld [vmem:[%s6 + $0x38] sm:$0xff]
        %909 = vset.pattern.permute.xlu0 0
        %910 = vperm.xlu0 %909, %v900
        %v911 = vpop.permute.xlu0 %910
        %914 = vset.pattern.permute.xlu0 0
        %915 = vperm.xlu0 %914, %v901
        %v916 = vpop.permute.xlu0 %915
        %919 = vset.pattern.permute.xlu0 0
        %920 = vperm.xlu0 %919, %v902
        %v921 = vpop.permute.xlu0 %920
        %924 = vset.pattern.permute.xlu0 0
        %925 = vperm.xlu0 %924, %v903
        %v926 = vpop.permute.xlu0 %925
        %929 = vset.pattern.permute.xlu0 0
        %930 = vperm.xlu0 %929, %v904
        %v931 = vpop.permute.xlu0 %930
        %934 = vset.pattern.permute.xlu0 0
        %935 = vperm.xlu0 %934, %v905
        %v936 = vpop.permute.xlu0 %935
        %939 = vset.pattern.permute.xlu0 0
        %940 = vperm.xlu0 %939, %v906
        %v941 = vpop.permute.xlu0 %940
        %944 = vset.pattern.permute.xlu0 0
        %945 = vperm.xlu0 %944, %v907
        %v946 = vpop.permute.xlu0 %945
        %v949 = vsel %vm674, %v892, 0
        %v952 = vsel %vm674, %v893, 0
        %v955 = vsel %vm674, %v894, 0
        %v958 = vsel %vm674, %v895, 0
        %v961 = vsel %vm674, %v896, 0
        %v964 = vsel %vm674, %v897, 0
        %v967 = vsel %vm674, %v898, 0
        %v970 = vsel %vm674, %v899, 0
        %972 = vmatprep.subr.mxu0 %v877
        %973 = vmatpush1.msra.mxu0 %v876
        %974 = vmatprep.subr.mxu0 %v879
        %975 = vmatpush1.msra.mxu0 %v878
        %976 = vmatprep.subr.mxu0 %v881
        %977 = vmatpush1.msra.mxu0 %v880
        %978 = vmatprep.subr.mxu0 %v883
        %979 = vmatpush1.msra.mxu0 %v882
        %980 = vmatprep.subr.mxu0 %v885
        %981 = vmatpush1.msra.mxu0 %v884
        %982 = vmatprep.subr.mxu0 %v887
        %983 = vmatpush1.msra.mxu0 %v886
        %984 = vmatprep.subr.mxu0 %v889
        %985 = vmatpush1.msra.mxu0 %v888
        %986 = vmatprep.subr.mxu0 %v891
        %987 = vmatpush1.msra.mxu0 %v890
        %988 = vmatprep.subr.mxu0 0.0
        %989 = vmatpush1.msra.mxu0 0.0
        %990 = vmatprep.subr.mxu0 0.0
        %991 = vmatpush1.msra.mxu0 0.0
        %992 = vmatprep.subr.mxu0 0.0
        %993 = vmatpush1.msra.mxu0 0.0
        %994 = vmatprep.subr.mxu0 0.0
        %995 = vmatpush1.msra.mxu0 0.0
        %996 = vmatprep.subr.mxu0 0.0
        %997 = vmatpush1.msra.mxu0 0.0
        %998 = vmatprep.subr.mxu0 0.0
        %999 = vmatpush1.msra.mxu0 0.0
        %1000 = vmatprep.subr.mxu0 0.0
        %1001 = vmatpush1.msra.mxu0 0.0
        %1002 = vmatprep.subr.mxu0 0.0
        %1003 = vmatpush1.msra.mxu0 0.0
        %1004 = vmatprep.subr.mxu0 0.0
        %1005 = vmatpush1.msra.mxu0 0.0
        %1006 = vmatprep.subr.mxu0 0.0
        %1007 = vmatpush1.msra.mxu0 0.0
        %1008 = vmatprep.subr.mxu0 0.0
        %1009 = vmatpush1.msra.mxu0 0.0
        %1010 = vmatprep.subr.mxu0 0.0
        %1011 = vmatpush1.msra.mxu0 0.0
        %1012 = vmatprep.subr.mxu0 0.0
        %1013 = vmatpush1.msra.mxu0 0.0
        %1014 = vmatprep.subr.mxu0 0.0
        %1015 = vmatpush1.msra.mxu0 0.0
        %1016 = vmatprep.subr.mxu0 0.0
        %1017 = vmatpush1.msra.mxu0 0.0
        %1018 = vmatprep.subr.mxu0 0.0
        %1019 = vmatpush1.msra.mxu0 0.0
        %1020 = vmatprep.subr.mxu0 0.0
        %1021 = vmatpush1.msra.mxu0 0.0
        %1022 = vmatprep.subr.mxu0 0.0
        %1023 = vmatpush1.msra.mxu0 0.0
        %1024 = vmatprep.subr.mxu0 0.0
        %1025 = vmatpush1.msra.mxu0 0.0
        %1026 = vmatprep.subr.mxu0 0.0
        %1027 = vmatpush1.msra.mxu0 0.0
        %1028 = vmatprep.subr.mxu0 0.0
        %1029 = vmatpush1.msra.mxu0 0.0
        %1030 = vmatprep.subr.mxu0 0.0
        %1031 = vmatpush1.msra.mxu0 0.0
        %1032 = vmatprep.subr.mxu0 0.0
        %1033 = vmatpush1.msra.mxu0 0.0
        %1034 = vmatprep.subr.mxu0 0.0
        %1035 = vmatpush1.msra.mxu0 0.0
        %1036 = vmatprep.mubr.f32.mxu0 0.0
        %1037 = vmatmul.mubr.f32.gmra.mrb[0].mxu0 %v949
        %v1038 = vpop.f32.mrb[0].mxu0
        %v1039 = vadd.f32 %v911, %v1038
        %v1040 = vpop.f32.mrb[0].mxu0
        %v1041 = vadd.f32 %v911, %v1040
        %1042 = vmatprep.mubr.f32.mxu0 0.0
        %1043 = vmatmul.mubr.f32.gmra.mrb[0].mxu0 %v952
        %v1044 = vpop.f32.mrb[0].mxu0
        %v1045 = vadd.f32 %v916, %v1044
        %v1046 = vpop.f32.mrb[0].mxu0
        %v1047 = vadd.f32 %v916, %v1046
        %1048 = vmatprep.mubr.f32.mxu0 0.0
        %1049 = vmatmul.mubr.f32.gmra.mrb[0].mxu0 %v955
        %v1050 = vpop.f32.mrb[0].mxu0
        %v1051 = vadd.f32 %v921, %v1050
        %v1052 = vpop.f32.mrb[0].mxu0
        %v1053 = vadd.f32 %v921, %v1052
        %1054 = vmatprep.mubr.f32.mxu0 0.0
        %1055 = vmatmul.mubr.f32.gmra.mrb[0].mxu0 %v958
        %v1056 = vpop.f32.mrb[0].mxu0
        %v1057 = vadd.f32 %v926, %v1056
        %v1058 = vpop.f32.mrb[0].mxu0
        %v1059 = vadd.f32 %v926, %v1058
        %1060 = vmatprep.mubr.f32.mxu0 0.0
        %1061 = vmatmul.mubr.f32.gmra.mrb[0].mxu0 %v961
        %v1062 = vpop.f32.mrb[0].mxu0
        %v1063 = vadd.f32 %v931, %v1062
        %v1064 = vpop.f32.mrb[0].mxu0
        %v1065 = vadd.f32 %v931, %v1064
        %1066 = vmatprep.mubr.f32.mxu0 0.0
        %1067 = vmatmul.mubr.f32.gmra.mrb[0].mxu0 %v964
        %v1068 = vpop.f32.mrb[0].mxu0
        %v1069 = vadd.f32 %v936, %v1068
        %v1070 = vpop.f32.mrb[0].mxu0
        %v1071 = vadd.f32 %v936, %v1070
        %1072 = vmatprep.mubr.f32.mxu0 0.0
        %1073 = vmatmul.mubr.f32.gmra.mrb[0].mxu0 %v967
        %v1074 = vpop.f32.mrb[0].mxu0
        %v1075 = vadd.f32 %v941, %v1074
        %v1076 = vpop.f32.mrb[0].mxu0
        %v1077 = vadd.f32 %v941, %v1076
        %1078 = vmatprep.mubr.f32.mxu0 0.0
        %1079 = vmatmul.mubr.f32.gmra.mrb[0].mxu0 %v970
        %v1080 = vpop.f32.mrb[0].mxu0
        %v1081 = vadd.f32 %v946, %v1080
        %v1082 = vpop.f32.mrb[0].mxu0
        %v1083 = vadd.f32 %v946, %v1082
        %1084 = vdwg.mxu0
        %v1085 = vmul.f32 %v1039, 0.5
        %v1086 = vmul.f32 %v1041, 0.5
        %v1087 = vmul.f32 %v1045, 0.5
        %v1088 = vmul.f32 %v1047, 0.5
        %v1089 = vmul.f32 %v1051, 0.5
        %v1090 = vmul.f32 %v1053, 0.5
        %v1091 = vmul.f32 %v1057, 0.5
        %v1092 = vmul.f32 %v1059, 0.5
        %v1093 = vmul.f32 %v1063, 0.5
        %v1094 = vmul.f32 %v1065, 0.5
        %v1095 = vmul.f32 %v1069, 0.5
        %v1096 = vmul.f32 %v1071, 0.5
        %v1097 = vmul.f32 %v1075, 0.5
        %v1098 = vmul.f32 %v1077, 0.5
        %v1099 = vmul.f32 %v1081, 0.5
        %v1100 = vmul.f32 %v1083, 0.5
        %v1101 = vmul.f32 %v1039, 0.70710677
        %v1102 = vmul.f32 %v1041, 0.70710677
        %v1103 = vmul.f32 %v1045, 0.70710677
        %v1104 = vmul.f32 %v1047, 0.70710677
        %v1105 = vmul.f32 %v1051, 0.70710677
        %v1106 = vmul.f32 %v1053, 0.70710677
        %v1107 = vmul.f32 %v1057, 0.70710677
        %v1108 = vmul.f32 %v1059, 0.70710677
        %v1109 = vmul.f32 %v1063, 0.70710677
        %v1110 = vmul.f32 %v1065, 0.70710677
        %v1111 = vmul.f32 %v1069, 0.70710677
        %v1112 = vmul.f32 %v1071, 0.70710677
        %v1113 = vmul.f32 %v1075, 0.70710677
        %v1114 = vmul.f32 %v1077, 0.70710677
        %v1115 = vmul.f32 %v1081, 0.70710677
        %v1116 = vmul.f32 %v1083, 0.70710677
        %v1117 = verf.f32.pop %v1101
        %v1118 = verf.f32.pop %v1102
        %v1119 = verf.f32.pop %v1103
        %v1120 = verf.f32.pop %v1104
        %v1121 = verf.f32.pop %v1105
        %v1122 = verf.f32.pop %v1106
        %v1123 = verf.f32.pop %v1107
        %v1124 = verf.f32.pop %v1108
        %v1125 = verf.f32.pop %v1109
        %v1126 = verf.f32.pop %v1110
        %v1127 = verf.f32.pop %v1111
        %v1128 = verf.f32.pop %v1112
        %v1129 = verf.f32.pop %v1113
        %v1130 = verf.f32.pop %v1114
        %v1131 = verf.f32.pop %v1115
        %v1132 = verf.f32.pop %v1116
        %v1133 = vadd.f32 %v1117, 1.0
        %v1134 = vadd.f32 %v1118, 1.0
        %v1135 = vadd.f32 %v1119, 1.0
        %v1136 = vadd.f32 %v1120, 1.0
        %v1137 = vadd.f32 %v1121, 1.0
        %v1138 = vadd.f32 %v1122, 1.0
        %v1139 = vadd.f32 %v1123, 1.0
        %v1140 = vadd.f32 %v1124, 1.0
        %v1141 = vadd.f32 %v1125, 1.0
        %v1142 = vadd.f32 %v1126, 1.0
        %v1143 = vadd.f32 %v1127, 1.0
        %v1144 = vadd.f32 %v1128, 1.0
        %v1145 = vadd.f32 %v1129, 1.0
        %v1146 = vadd.f32 %v1130, 1.0
        %v1147 = vadd.f32 %v1131, 1.0
        %v1148 = vadd.f32 %v1132, 1.0
        %v1149 = vmul.f32 %v1085, %v1133
        %v1150 = vmul.f32 %v1086, %v1134
        %v1151 = vmul.f32 %v1087, %v1135
        %v1152 = vmul.f32 %v1088, %v1136
        %v1153 = vmul.f32 %v1089, %v1137
        %v1154 = vmul.f32 %v1090, %v1138
        %v1155 = vmul.f32 %v1091, %v1139
        %v1156 = vmul.f32 %v1092, %v1140
        %v1157 = vmul.f32 %v1093, %v1141
        %v1158 = vmul.f32 %v1094, %v1142
        %v1159 = vmul.f32 %v1095, %v1143
        %v1160 = vmul.f32 %v1096, %v1144
        %v1161 = vmul.f32 %v1097, %v1145
        %v1162 = vmul.f32 %v1098, %v1146
        %v1163 = vmul.f32 %v1099, %v1147
        %v1164 = vmul.f32 %v1100, %v1148
        %v1165 = vld [vmem:[%s7] sm:$0x1]
        %v1166 = vld [vmem:[#allocation2] sm:$0x1]
        %1168 = vset.pattern.permute.xlu0 0
        %1169 = vperm.xlu0 %1168, %v1166
        %v1170 = vpop.permute.xlu0 %1169
        %v1172 = vlaneseq
        %v1173 = vshrl.u32 %v1172, 7
        %v1174 = vsub.s32 0, %v1173
        %v1175 = vrot.slane %v1170, %v1174
        %v1177 = vsel %vm674, %v1165, 0
        %1179 = vmatprep.subr.mxu0 %v1150
        %1180 = vmatpush1.msra.mxu0 %v1149
        %1181 = vmatprep.subr.mxu0 %v1152
        %1182 = vmatpush1.msra.mxu0 %v1151
        %1183 = vmatprep.subr.mxu0 %v1154
        %1184 = vmatpush1.msra.mxu0 %v1153
        %1185 = vmatprep.subr.mxu0 %v1156
        %1186 = vmatpush1.msra.mxu0 %v1155
        %1187 = vmatprep.subr.mxu0 %v1158
        %1188 = vmatpush1.msra.mxu0 %v1157
        %1189 = vmatprep.subr.mxu0 %v1160
        %1190 = vmatpush1.msra.mxu0 %v1159
        %1191 = vmatprep.subr.mxu0 %v1162
        %1192 = vmatpush1.msra.mxu0 %v1161
        %1193 = vmatprep.subr.mxu0 %v1164
        %1194 = vmatpush1.msra.mxu0 %v1163
        %1195 = vmatprep.subr.mxu0 0.0
        %1196 = vmatpush1.msra.mxu0 0.0
        %1197 = vmatprep.subr.mxu0 0.0
        %1198 = vmatpush1.msra.mxu0 0.0
        %1199 = vmatprep.subr.mxu0 0.0
        %1200 = vmatpush1.msra.mxu0 0.0
        %1201 = vmatprep.subr.mxu0 0.0
        %1202 = vmatpush1.msra.mxu0 0.0
        %1203 = vmatprep.subr.mxu0 0.0
        %1204 = vmatpush1.msra.mxu0 0.0
        %1205 = vmatprep.subr.mxu0 0.0
        %1206 = vmatpush1.msra.mxu0 0.0
        %1207 = vmatprep.subr.mxu0 0.0
        %1208 = vmatpush1.msra.mxu0 0.0
        %1209 = vmatprep.subr.mxu0 0.0
        %1210 = vmatpush1.msra.mxu0 0.0
        %1211 = vmatprep.subr.mxu0 0.0
        %1212 = vmatpush1.msra.mxu0 0.0
        %1213 = vmatprep.subr.mxu0 0.0
        %1214 = vmatpush1.msra.mxu0 0.0
        %1215 = vmatprep.subr.mxu0 0.0
        %1216 = vmatpush1.msra.mxu0 0.0
        %1217 = vmatprep.subr.mxu0 0.0
        %1218 = vmatpush1.msra.mxu0 0.0
        %1219 = vmatprep.subr.mxu0 0.0
        %1220 = vmatpush1.msra.mxu0 0.0
        %1221 = vmatprep.subr.mxu0 0.0
        %1222 = vmatpush1.msra.mxu0 0.0
        %1223 = vmatprep.subr.mxu0 0.0
        %1224 = vmatpush1.msra.mxu0 0.0
        %1225 = vmatprep.subr.mxu0 0.0
        %1226 = vmatpush1.msra.mxu0 0.0
        %1227 = vmatprep.subr.mxu0 0.0
        %1228 = vmatpush1.msra.mxu0 0.0
        %1229 = vmatprep.subr.mxu0 0.0
        %1230 = vmatpush1.msra.mxu0 0.0
        %1231 = vmatprep.subr.mxu0 0.0
        %1232 = vmatpush1.msra.mxu0 0.0
        %1233 = vmatprep.subr.mxu0 0.0
        %1234 = vmatpush1.msra.mxu0 0.0
        %1235 = vmatprep.subr.mxu0 0.0
        %1236 = vmatpush1.msra.mxu0 0.0
        %1237 = vmatprep.subr.mxu0 0.0
        %1238 = vmatpush1.msra.mxu0 0.0
        %1239 = vmatprep.subr.mxu0 0.0
        %1240 = vmatpush1.msra.mxu0 0.0
        %1241 = vmatprep.subr.mxu0 0.0
        %1242 = vmatpush1.msra.mxu0 0.0
        %1243 = vmatprep.mubr.f32.mxu0 0.0
        %1244 = vmatmul.mubr.f32.gmra.mrb[0].mxu0 %v1177
        %v1245 = vpop.f32.mrb[0].mxu0
        %v1246 = vadd.f32 %v1175, %v1245
        %v1247 = vpop.f32.mrb[0].mxu0
        %v1248 = vadd.f32 %v1175, %v1247
        %1249 = vdwg.mxu0
        %v1252 = vcombine.low %v1246, %v1248
        %v1254 = vunpack.c.l.s4 1966171168
        %v1255 = vunpack.c.0.s8 %v1254
        %v1256 = vlaneseq
        %v1257 = vshrl.u32 %v1256, 7
        %v1258 = vsub.s32 %v1255, %v1257
        %v1259 = vrot.slane %v1252, %v1258
        %v1261 = vunpack.c.l.s4 1966171168
        %v1262 = vunpack.c.0.s8 %v1261
        %v1263 = vlaneseq
        %v1264 = vshrl.u32 %v1263, 7
        %v1265 = vsub.s32 %v1262, %v1264
        %v1266 = vrot.slane %v1259, %v1265
        %v1268 = vlaneseq
        %vm1269 = vcmp.ge.s32.totalorder %v1268, 0
        %vm1270 = vcmp.lt.s32.totalorder %v1268, 256
        %vm1271 = vmand %vm1269, %vm1270
        %1272 = vst.msk [vmem:[%s328] sm:$0x3] %vm1271, %v1266
        %s1273 = sand.u32 %s227, 1
        %s1274 = scalar_lea.sflag [#allocation4], %s1273
        %s1275 = sand.u32 %s227, 1
        %s1276 = smul.addr %s1275, 2
        %s1277 = scalar_lea.vmem [#allocation3], %s1276
        // Predicated region
        $region57: #{tpu_custom_call.1} parent=55 // pred_check
          %p1278 = pneg %p237
        $region58: #{tpu_custom_call.1} parent=55 // pred_check_branch
          %1280 = sbr.rel (%p1278) target = $region60
        $region59: #{tpu_custom_call.1} parent=55 // pred_region
          %s1281 = smul.u32 2, %s25
          %s1283 = ssub.s32 32, 32
          %1284 = vsyncadd %s1274, %s1283
          %s1285 = smul.addr %s1281, 16
          %s1286 = scalar_lea.hbm %s9, %s1285
          %s1288 = sshll.u32 %s1277, 4
          %s1289 = int_to_ptr.vmem [resolvable:$true] %s1288
          %1291 = dma.vmem_to_hbm [thread:$0]  %s1289, 32, %s1286, %s1274
        $region60: #{tpu_custom_call.1} parent=55 // pred_fallthru
          _
      $region56: #{tpu_custom_call.1} parent=5 // pred_fallthru
        _
      %p1292 = scmp.le.s32.totalorder 2, %s20
      // Predicated region
      $region61: #{tpu_custom_call.1} parent=5 // pred_check
        %p1293 = pneg %p1292
      $region62: #{tpu_custom_call.1} parent=5 // pred_check_branch
        %1295 = sbr.rel (%p1293) target = $region64
      $region63: #{tpu_custom_call.1} parent=5 // pred_region
        %s1296 = ssub.s32 %s20, 2
        // Predicated region
        $region65: #{tpu_custom_call.1} parent=63 // pred_check
          %p1297 = pneg %p243
        $region66: #{tpu_custom_call.1} parent=63 // pred_check_branch
          %1299 = sbr.rel (%p1297) target = $region68
        $region67: #{tpu_custom_call.1} parent=63 // pred_region
          %s1300 = sand.u32 %s228, 1
          %s1301 = scalar_lea.sflag [#allocation4], %s1300
          %s1302 = sand.u32 %s228, 1
          %s1303 = smul.addr %s1302, 2
          %s1304 = scalar_lea.vmem [#allocation3], %s1303
          %1305 = dma.done %s1301, 32
        $region68: #{tpu_custom_call.1} parent=63 // pred_fallthru
          _
      $region64: #{tpu_custom_call.1} parent=5 // pred_fallthru
        _
    $region6: #{tpu_custom_call.1} parent=1 // loop_footer
      %s24 = sadd.s32 1, %s20
    $region7: #{tpu_custom_call.1} parent=1 // loop_footer_branch
      %19 = sbr.rel target = $region3
    $region8: #{tpu_custom_call.1} parent=1 // loop_exit
      _
    %1306 = vsyncpa [#allocation4], 1
    %s1307 = scalar_lea.sflag [#allocation4], 1
    %1308 = vsyncpa %s1307, 1

</llo_original>
